<compile_context>
chip_gen: v7x
topology: tpu7x:2x2x1
jax: 0.10.0
libtpu: 0.0.40
codegen_flags: <defaults>
</compile_context>

<pallas_src>
import math
import functools

import jax
import jax.numpy as jnp
from jax import lax
from jax.experimental import pallas as pl
from jax.experimental.pallas import tpu as pltpu


_INV_SQRT2 = 1.0 / math.sqrt(2.0)


def _gelu_exact(x):
    # torch F.gelu default = exact erf-based GELU (computed here in f32).
    return 0.5 * x * (1.0 + lax.erf(x * _INV_SQRT2))


def _round_up(x, m):
    return (x + m - 1) // m * m


def _pattention_kernel(x_ref, k_ref, v_ref, o_ref, *,
                       norm_type, scale_factor, n_tokens):
    x = x_ref[...]                 # (bm, d1p)  native dtype -> straight to MXU
    k = k_ref[...]                 # (np, d1p)
    v = v_ref[...]                 # (np, d2p)

    # Fold the (optional) scale into the much smaller query tile instead of the
    # (bm, n) attention matrix; skip it entirely when it is 1.0.
    if scale_factor != 1.0:
        x = x * jnp.asarray(scale_factor, dtype=x.dtype)

    # attn = q @ K^T, expressed as a contraction over dim 1 of both operands so
    # the MXU consumes K in its stored (n, d1) layout (no explicit transpose).
    attn = lax.dot_general(
        x, k, dimension_numbers=(((1,), (1,)), ((), ())),
        preferred_element_type=jnp.float32)            # (bm, np) f32

    # nonlinear_norm_func: the torch module returns `nonlinear_outputs`
    # (NOT the normalized tensor) for 'softmax' and 'gelu_l2_norm'.
    if norm_type == "softmax":
        w = jnp.exp(attn)
    elif norm_type == "gelu_l2_norm":
        w = _gelu_exact(attn)
    elif norm_type == "l2_norm_gelu":
        # attn / ||attn||_2 * sqrt(n)  ==  attn * (rsqrt(sum(attn^2)) * sqrt(n))
        # Padded attn columns are exactly zero, so the sum over the padded axis
        # equals the unpadded l2 norm; sqrt(n) uses the unpadded token count.
        inv_l2 = lax.rsqrt(jnp.sum(attn * attn, axis=-1, keepdims=True))
        w = _gelu_exact(attn * (inv_l2 * math.sqrt(n_tokens)))
    else:
        raise ValueError(f"unknown norm_activation_type: {norm_type}")

    # TODO(synk): dropout with p > 0 (train=True) not implemented in-kernel.

    # out = w @ V -- feed the MXU in V's dtype, accumulate in f32.
    out = lax.dot_general(
        w.astype(v.dtype), v, dimension_numbers=(((1,), (0,)), ((), ())),
        preferred_element_type=jnp.float32)             # (bm, d2p)
    o_ref[...] = out.astype(o_ref.dtype)


def pattention_forward(inputs, key_tokens, value_tokens, *,
                       norm_activation_type="l2_norm_gelu",
                       scale=None, block_m=1024):
    """inputs: [..., L, d1]; key_tokens: [n, d1]; value_tokens: [n, d2]."""
    scale_factor = 1.0 if scale is None else float(scale)
    *lead, L, d1 = inputs.shape
    n, d1k = key_tokens.shape
    n_v, d2 = value_tokens.shape
    assert d1 == d1k and n == n_v

    # Keep MXU operands in the input dtype (no blanket f32 upcast).
    key_tokens = key_tokens.astype(inputs.dtype)
    value_tokens = value_tokens.astype(inputs.dtype)

    x2d = inputs.reshape(-1, d1)                # (M, d1)
    M = x2d.shape[0]

    # Lane-dense padding: contraction dim / output dim / token count -> x128.
    d1p = _round_up(d1, 128)
    d2p = _round_up(d2, 128)
    n_p = _round_up(n, 128)

    itemsize = jnp.dtype(inputs.dtype).itemsize

    # Largest 128-aligned row tile whose working set fits the VMEM budget.
    bm = min(int(block_m), _round_up(max(M, 1), 128))
    bm = max(128, (bm // 128) * 128)
    kv_bytes = 2 * n_p * (d1p + d2p) * itemsize          # double-buffered K/V
    budget = 48 * 1024 * 1024                            # safe on 64 MiB v7x VMEM
    per_row = 2 * d1p * itemsize + 2 * d2p * itemsize + 2 * n_p * 4
    while bm > 128 and kv_bytes + bm * per_row > budget:
        bm = max(128, ((bm // 2) // 128) * 128)
    block_m = bm

    Mp = _round_up(M, block_m)

    x_pad = jnp.pad(x2d, ((0, Mp - M), (0, d1p - d1)))
    k_pad = jnp.pad(key_tokens, ((0, n_p - n), (0, d1p - d1)))
    v_pad = jnp.pad(value_tokens, ((0, n_p - n), (0, d2p - d2)))

    kernel = functools.partial(
        _pattention_kernel,
        norm_type=norm_activation_type,
        scale_factor=scale_factor,
        n_tokens=n,
    )

    cost = pl.CostEstimate(
        flops=2 * M * n * (d1 + d2),
        transcendentals=M * n,
        bytes_accessed=(M * d1 + n * d1 + n * d2 + M * d2) * itemsize,
    )

    est_vmem = (2 * block_m * d1p * itemsize
                + kv_bytes
                + 2 * block_m * d2p * itemsize
                + 2 * block_m * n_p * 4)
    cp_kwargs = dict(dimension_semantics=("parallel",))
    if est_vmem > 30 * 1024 * 1024:
        cp_kwargs["vmem_limit_bytes"] = int(min(est_vmem * 1.25 + (4 << 20),
                                                112 << 20))

    out2d = pl.pallas_call(
        kernel,
        out_shape=jax.ShapeDtypeStruct((Mp, d2p), inputs.dtype),
        grid_spec=pltpu.PrefetchScalarGridSpec(
            num_scalar_prefetch=0,
            grid=(Mp // block_m,),
            in_specs=[
                pl.BlockSpec((block_m, d1p), lambda i: (i, 0)),   # query tile
                pl.BlockSpec((n_p, d1p), lambda i: (0, 0)),       # key tokens
                pl.BlockSpec((n_p, d2p), lambda i: (0, 0)),       # value tokens
            ],
            out_specs=pl.BlockSpec((block_m, d2p), lambda i: (i, 0)),
        ),
        compiler_params=pltpu.CompilerParams(**cp_kwargs),
        cost_estimate=cost,
    )(x_pad, k_pad, v_pad)

    return out2d[:M, :d2].reshape(*lead, L, d2)


def _reference_forward(inputs, key_tokens, value_tokens, norm_type, scale=None):
    scale_factor = 1.0 if scale is None else scale
    k = key_tokens.astype(jnp.float32)
    v = value_tokens.astype(jnp.float32)
    attn = jnp.einsum("...ld,nd->...ln", inputs.astype(jnp.float32), k)
    attn = attn * scale_factor
    if norm_type == "softmax":
        w = jnp.exp(attn)
    elif norm_type == "gelu_l2_norm":
        w = _gelu_exact(attn)
    elif norm_type == "l2_norm_gelu":
        l2 = jnp.linalg.norm(attn, axis=-1, keepdims=True)
        w = _gelu_exact(attn / l2 * math.sqrt(k.shape[0]))
    else:
        raise ValueError(norm_type)
    return jnp.einsum("...ln,nd->...ld", w, v).astype(inputs.dtype)


if __name__ == "__main__":
    # Small shapes consistent with the module: d1 (key dim), d2 (value dim),
    # n parameter tokens, inputs [batch, L, d1]. The wrapper pads them to
    # lane-dense tile sizes internally.
    batch, L, d1, d2, n = 2, 8, 32, 48, 64

    key = jax.random.PRNGKey(0)
    k_in, k_key, k_val = jax.random.split(key, 3)

    inputs = jax.random.normal(k_in, (batch, L, d1), dtype=jnp.float32)
    # Deterministic synthetic param init (the torch module uses torch.rand then
    # an init method; uniform [0,1) draws here, not a checkpoint load).
    key_param_tokens = jax.random.uniform(k_key, (n, d1), dtype=jnp.float32)
    value_param_tokens = jax.random.uniform(k_val, (n, d2), dtype=jnp.float32)

    for norm_type, scale in (("l2_norm_gelu", None),
                             ("gelu_l2_norm", None),
                             ("softmax", 0.125)):
        out = pattention_forward(
            inputs, key_param_tokens, value_param_tokens,
            norm_activation_type=norm_type, scale=scale,
        )
        out = jax.block_until_ready(out)

        ref = _reference_forward(inputs, key_param_tokens, value_param_tokens,
                                 norm_type, scale=scale)
        assert out.shape == (batch, L, d2)
        assert jnp.allclose(out, ref, atol=1e-4, rtol=1e-4), \
            f"mismatch vs reference ({norm_type})"

    print("KERNEL_OK")
</pallas_src>

<mosaic_0001>
module attributes {stable_mosaic.version = 11 : i64} {
  func.func @_pattention_kernel(%arg0: i32, %arg1: memref<128x128xf32, #tpu.memory_space<vmem>>, %arg2: memref<128x128xf32, #tpu.memory_space<vmem>>, %arg3: memref<128x128xf32, #tpu.memory_space<vmem>>, %arg4: memref<128x128xf32, #tpu.memory_space<vmem>>) attributes {dimension_semantics = [#tpu.dimension_semantics<parallel>], iteration_bounds = array<i64: 1>, scalar_prefetch = 0 : i64, scratch_operands = 0 : i64, tpu.core_type = #tpu.core_type<tc>, window_params = [{transform_indices = @transform_0, window_bounds = array<i64: 128, 128>}, {pipeline_mode = #tpu.pipeline_mode<synchronous>, transform_indices = @transform_1, window_bounds = array<i64: 128, 128>}, {pipeline_mode = #tpu.pipeline_mode<synchronous>, transform_indices = @transform_2, window_bounds = array<i64: 128, 128>}, {transform_indices = @transform_3, window_bounds = array<i64: 128, 128>}]} {
    %c0 = arith.constant 0 : index
    %c0_0 = arith.constant 0 : index
    %0 = vector.load %arg1[%c0, %c0_0] : memref<128x128xf32, #tpu.memory_space<vmem>>, vector<128x128xf32>
    %c0_1 = arith.constant 0 : index
    %c0_2 = arith.constant 0 : index
    %1 = vector.load %arg2[%c0_1, %c0_2] : memref<128x128xf32, #tpu.memory_space<vmem>>, vector<128x128xf32>
    %c0_3 = arith.constant 0 : index
    %c0_4 = arith.constant 0 : index
    %2 = vector.load %arg3[%c0_3, %c0_4] : memref<128x128xf32, #tpu.memory_space<vmem>>, vector<128x128xf32>
    %cst = arith.constant dense<0.000000e+00> : vector<128x128xf32>
    %3 = tpu.matmul %0, %1, %cst {dimension_numbers = #tpu.dot_dimension_numbers<[1], [1], [0], [0], [0, 0, 1, 0], [], []>} : vector<128x128xf32>, vector<128x128xf32>, vector<128x128xf32> -> vector<128x128xf32>
    %4 = arith.mulf %3, %3 : vector<128x128xf32>
    %cst_5 = arith.constant dense<0.000000e+00> : vector<128xf32>
    %5 = vector.multi_reduction <add>, %4, %cst_5 [1] : vector<128x128xf32> to vector<128xf32>
    %6 = vector.shape_cast %5 : vector<128xf32> to vector<128x1xf32>
    %7 = math.rsqrt %6 : vector<128x1xf32>
    %cst_6 = arith.constant 8.000000e+00 : f32
    %8 = vector.broadcast %cst_6 : f32 to vector<128x1xf32>
    %9 = arith.mulf %7, %8 : vector<128x1xf32>
    %10 = vector.broadcast %9 : vector<128x1xf32> to vector<128x128xf32>
    %11 = arith.mulf %3, %10 : vector<128x128xf32>
    %cst_7 = arith.constant 5.000000e-01 : f32
    %12 = vector.broadcast %cst_7 : f32 to vector<128x128xf32>
    %13 = arith.mulf %12, %11 : vector<128x128xf32>
    %cst_8 = arith.constant 0.707106769 : f32
    %14 = vector.broadcast %cst_8 : f32 to vector<128x128xf32>
    %15 = arith.mulf %11, %14 : vector<128x128xf32>
    %16 = math.erf %15 : vector<128x128xf32>
    %cst_9 = arith.constant 1.000000e+00 : f32
    %17 = vector.broadcast %cst_9 : f32 to vector<128x128xf32>
    %18 = arith.addf %17, %16 : vector<128x128xf32>
    %19 = arith.mulf %13, %18 : vector<128x128xf32>
    %cst_10 = arith.constant dense<0.000000e+00> : vector<128x128xf32>
    %20 = tpu.matmul %19, %2, %cst_10 {dimension_numbers = #tpu.dot_dimension_numbers<[1], [0], [0], [1], [0, 0, 1, 1], [], []>} : vector<128x128xf32>, vector<128x128xf32>, vector<128x128xf32> -> vector<128x128xf32>
    %c0_11 = arith.constant 0 : index
    %c0_12 = arith.constant 0 : index
    %21 = vector.load %arg4[%c0_11, %c0_12] : memref<128x128xf32, #tpu.memory_space<vmem>>, vector<128x128xf32>
    tpu.vector_store %arg4[%c0_11, %c0_12], %20 {strides = array<i32>} : memref<128x128xf32, #tpu.memory_space<vmem>>, vector<128x128xf32>,
    return
  }
  func.func @transform_0(%arg0: i32) -> (i32, i32) {
    %c0_i32 = arith.constant 0 : i32
    %c0_i32_0 = arith.constant 0 : i32
    return %arg0, %c0_i32 : i32, i32
  }
  func.func @transform_1(%arg0: i32) -> (i32, i32) {
    %c0_i32 = arith.constant 0 : i32
    %c0_i32_0 = arith.constant 0 : i32
    %c0_i32_1 = arith.constant 0 : i32
    return %c0_i32, %c0_i32_0 : i32, i32
  }
  func.func @transform_2(%arg0: i32) -> (i32, i32) {
    %c0_i32 = arith.constant 0 : i32
    %c0_i32_0 = arith.constant 0 : i32
    %c0_i32_1 = arith.constant 0 : i32
    return %c0_i32, %c0_i32_0 : i32, i32
  }
  func.func @transform_3(%arg0: i32) -> (i32, i32) {
    %c0_i32 = arith.constant 0 : i32
    %c0_i32_0 = arith.constant 0 : i32
    return %arg0, %c0_i32 : i32, i32
  }
}

</mosaic_0001>

<llo_original>
// kernel: tpu_custom_call.1
$region0: #{tpu_custom_call.1}
  #allocation0 [shape = 'u32[]', space=smem, size = 0x4, offset = 0x4, fixed_abs, tag = 'smem constant byte address 0x4 - core index']
  #allocation1 [shape = 'u32[144,128]{1,0:T(1,128)}', space=vmem, size = 0x12000, scoped, tag = 'internal scratch']
  %s0 = inlined_call_operand.hbm [shape: f32[128,128], index: 0, kind: input, shape index: {}]
  %s1 = inlined_call_operand.hbm [shape: f32[128,128], index: 1, kind: input, shape index: {}]
  %s2 = inlined_call_operand.hbm [shape: f32[128,128], index: 2, kind: input, shape index: {}]
  %s3 = inlined_call_operand.hbm [shape: f32[128,128], index: 3, kind: output, shape index: {}]
  %s4 = sld [smem:[#allocation0]]
  $region34: #{tpu_custom_call.1} parent=0
    _
  %s6 = ssub.s32 1, %s4
  %s7 = scalar_select 0, %s6, %s4
  $region1: #{tpu_custom_call.1} parent=0
    #allocation2 [shape = 'u8[65536]{0}', space=vmem, size = 0x10000, scoped, tag = 'input window, operand 0, single buffered']
    #allocation3 [shape = 's32[1]{0}', space=sflag, size = 0x4, scoped, tag = 'scoped memory for tpu_custom_call.1']
    #allocation4 [shape = 's32[1]{0}', space=sflag, size = 0x4, scoped, tag = 'scoped memory for tpu_custom_call.1']
    #allocation5 [shape = 'u8[65536]{0}', space=vmem, size = 0x10000, scoped, tag = 'input window, operand 1, single buffered']
    #allocation6 [shape = 's32[1]{0}', space=sflag, size = 0x4, scoped, tag = 'scoped memory for tpu_custom_call.1']
    #allocation7 [shape = 'u8[65536]{0}', space=vmem, size = 0x10000, scoped, tag = 'input window, operand 2, single buffered']
    #allocation8 [shape = 'u8[65536]{0}', space=vmem, size = 0x10000, scoped, tag = 'output window, operand 0, single buffered']
    %8 = vsyncpa [#allocation3], 0
    %9 = vsyncpa [#allocation6], 0
    %10 = vsyncpa [#allocation4], 0
    // Predicated region
    $region2: #{tpu_custom_call.1} parent=1 // pred_check
      _
    $region3: #{tpu_custom_call.1} parent=1 // pred_check_branch
      %12 = sbr.rel (0) target = $region5
    $region4: #{tpu_custom_call.1} parent=1 // pred_region
      %s14 = ssub.s32 2048, 2048
      %15 = vsyncadd [#allocation3], %s14
      %s16 = sshll.u32 [#allocation2], 4
      %s17 = int_to_ptr.vmem [resolvable:$true] %s16
      %22 = dma.hbm_to_vmem [thread:$0]  %s0, 2048, %s17, [#allocation3], 128, 128, 8
    $region5: #{tpu_custom_call.1} parent=1 // pred_fallthru
      _
    // Predicated region
    $region6: #{tpu_custom_call.1} parent=1 // pred_check
      _
    $region7: #{tpu_custom_call.1} parent=1 // pred_check_branch
      %24 = sbr.rel (0) target = $region9
    $region8: #{tpu_custom_call.1} parent=1 // pred_region
      %s26 = ssub.s32 2048, 2048
      %27 = vsyncadd [#allocation6], %s26
      %s28 = sshll.u32 [#allocation5], 4
      %s29 = int_to_ptr.vmem [resolvable:$true] %s28
      %34 = dma.hbm_to_vmem [thread:$0]  %s1, 2048, %s29, [#allocation6], 128, 128, 8
    $region9: #{tpu_custom_call.1} parent=1 // pred_fallthru
      _
    // Predicated region
    $region10: #{tpu_custom_call.1} parent=1 // pred_check
      _
    $region11: #{tpu_custom_call.1} parent=1 // pred_check_branch
      %36 = sbr.rel (0) target = $region13
    $region12: #{tpu_custom_call.1} parent=1 // pred_region
      %s38 = ssub.s32 2048, 2048
      %39 = vsyncadd [#allocation6], %s38
      %s40 = sshll.u32 [#allocation7], 4
      %s41 = int_to_ptr.vmem [resolvable:$true] %s40
      %46 = dma.hbm_to_vmem [thread:$0]  %s2, 2048, %s41, [#allocation6], 128, 128, 8
    $region13: #{tpu_custom_call.1} parent=1 // pred_fallthru
      _
    // Predicated region
    $region14: #{tpu_custom_call.1} parent=1 // pred_check
      _
    $region15: #{tpu_custom_call.1} parent=1 // pred_check_branch
      %48 = sbr.rel (0) target = $region17
    $region16: #{tpu_custom_call.1} parent=1 // pred_region
      %49 = dma.done [#allocation3], 2048
    $region17: #{tpu_custom_call.1} parent=1 // pred_fallthru
      _
    // Predicated region
    $region18: #{tpu_custom_call.1} parent=1 // pred_check
      _
    $region19: #{tpu_custom_call.1} parent=1 // pred_check_branch
      %51 = sbr.rel (0) target = $region21
    $region20: #{tpu_custom_call.1} parent=1 // pred_region
      %52 = dma.done [#allocation6], 2048
    $region21: #{tpu_custom_call.1} parent=1 // pred_fallthru
      _
    // Predicated region
    $region22: #{tpu_custom_call.1} parent=1 // pred_check
      _
    $region23: #{tpu_custom_call.1} parent=1 // pred_check_branch
      %54 = sbr.rel (0) target = $region25
    $region24: #{tpu_custom_call.1} parent=1 // pred_region
      %55 = dma.done [#allocation6], 2048
    $region25: #{tpu_custom_call.1} parent=1 // pred_fallthru
      _
    %v56 = vld [vmem:[#allocation2] sm:$0xff]
    %v57 = vld [vmem:[#allocation2 + $0x8] sm:$0xff]
    %v58 = vld [vmem:[#allocation2 + $0x10] sm:$0xff]
    %v59 = vld [vmem:[#allocation2 + $0x18] sm:$0xff]
    %v60 = vld [vmem:[#allocation2 + $0x20] sm:$0xff]
    %v61 = vld [vmem:[#allocation2 + $0x28] sm:$0xff]
    %v62 = vld [vmem:[#allocation2 + $0x30] sm:$0xff]
    %v63 = vld [vmem:[#allocation2 + $0x38] sm:$0xff]
    %v64 = vld [vmem:[#allocation2 + $0x40] sm:$0xff]
    %v65 = vld [vmem:[#allocation2 + $0x48] sm:$0xff]
    %v66 = vld [vmem:[#allocation2 + $0x50] sm:$0xff]
    %v67 = vld [vmem:[#allocation2 + $0x58] sm:$0xff]
    %v68 = vld [vmem:[#allocation2 + $0x60] sm:$0xff]
    %v69 = vld [vmem:[#allocation2 + $0x68] sm:$0xff]
    %v70 = vld [vmem:[#allocation2 + $0x70] sm:$0xff]
    %v71 = vld [vmem:[#allocation2 + $0x78] sm:$0xff]
    %v72 = vld [vmem:[#allocation5] sm:$0xff]
    %v73 = vld [vmem:[#allocation5 + $0x8] sm:$0xff]
    %v74 = vld [vmem:[#allocation5 + $0x10] sm:$0xff]
    %v75 = vld [vmem:[#allocation5 + $0x18] sm:$0xff]
    %v76 = vld [vmem:[#allocation5 + $0x20] sm:$0xff]
    %v77 = vld [vmem:[#allocation5 + $0x28] sm:$0xff]
    %v78 = vld [vmem:[#allocation5 + $0x30] sm:$0xff]
    %v79 = vld [vmem:[#allocation5 + $0x38] sm:$0xff]
    %v80 = vld [vmem:[#allocation5 + $0x40] sm:$0xff]
    %v81 = vld [vmem:[#allocation5 + $0x48] sm:$0xff]
    %v82 = vld [vmem:[#allocation5 + $0x50] sm:$0xff]
    %v83 = vld [vmem:[#allocation5 + $0x58] sm:$0xff]
    %v84 = vld [vmem:[#allocation5 + $0x60] sm:$0xff]
    %v85 = vld [vmem:[#allocation5 + $0x68] sm:$0xff]
    %v86 = vld [vmem:[#allocation5 + $0x70] sm:$0xff]
    %v87 = vld [vmem:[#allocation5 + $0x78] sm:$0xff]
    %v88 = vld [vmem:[#allocation7] sm:$0xff]
    %v89 = vld [vmem:[#allocation7 + $0x8] sm:$0xff]
    %v90 = vld [vmem:[#allocation7 + $0x10] sm:$0xff]
    %v91 = vld [vmem:[#allocation7 + $0x18] sm:$0xff]
    %v92 = vld [vmem:[#allocation7 + $0x20] sm:$0xff]
    %v93 = vld [vmem:[#allocation7 + $0x28] sm:$0xff]
    %v94 = vld [vmem:[#allocation7 + $0x30] sm:$0xff]
    %v95 = vld [vmem:[#allocation7 + $0x38] sm:$0xff]
    %v96 = vld [vmem:[#allocation7 + $0x40] sm:$0xff]
    %v97 = vld [vmem:[#allocation7 + $0x48] sm:$0xff]
    %v98 = vld [vmem:[#allocation7 + $0x50] sm:$0xff]
    %v99 = vld [vmem:[#allocation7 + $0x58] sm:$0xff]
    %v100 = vld [vmem:[#allocation7 + $0x60] sm:$0xff]
    %v101 = vld [vmem:[#allocation7 + $0x68] sm:$0xff]
    %v102 = vld [vmem:[#allocation7 + $0x70] sm:$0xff]
    %v103 = vld [vmem:[#allocation7 + $0x78] sm:$0xff]
    %104 = vmatprep.subr.mxu0 0.0
    %105 = vmatpush1.xpose.msra.mxu0 %v72
    %106 = vmatprep.subr.mxu0 0.0
    %107 = vmatpush1.xpose.msra.mxu0 %v73
    %108 = vmatprep.subr.mxu0 0.0
    %109 = vmatpush1.xpose.msra.mxu0 %v74
    %110 = vmatprep.subr.mxu0 0.0
    %111 = vmatpush1.xpose.msra.mxu0 %v75
    %112 = vmatprep.subr.mxu0 0.0
    %113 = vmatpush1.xpose.msra.mxu0 %v76
    %114 = vmatprep.subr.mxu0 0.0
    %115 = vmatpush1.xpose.msra.mxu0 %v77
    %116 = vmatprep.subr.mxu0 0.0
    %117 = vmatpush1.xpose.msra.mxu0 %v78
    %118 = vmatprep.subr.mxu0 0.0
    %119 = vmatpush1.xpose.msra.mxu0 %v79
    %120 = vmatprep.subr.mxu0 0.0
    %121 = vmatpush1.xpose.msra.mxu0 %v80
    %122 = vmatprep.subr.mxu0 0.0
    %123 = vmatpush1.xpose.msra.mxu0 %v81
    %124 = vmatprep.subr.mxu0 0.0
    %125 = vmatpush1.xpose.msra.mxu0 %v82
    %126 = vmatprep.subr.mxu0 0.0
    %127 = vmatpush1.xpose.msra.mxu0 %v83
    %128 = vmatprep.subr.mxu0 0.0
    %129 = vmatpush1.xpose.msra.mxu0 %v84
    %130 = vmatprep.subr.mxu0 0.0
    %131 = vmatpush1.xpose.msra.mxu0 %v85
    %132 = vmatprep.subr.mxu0 0.0
    %133 = vmatpush1.xpose.msra.mxu0 %v86
    %134 = vmatprep.subr.mxu0 0.0
    %135 = vmatpush1.xpose.msra.mxu0 %v87
    %136 = vmatprep.subr.mxu0 0.0
    %137 = vmatpush1.xpose.msra.mxu0 0.0
    %138 = vmatprep.subr.mxu0 0.0
    %139 = vmatpush1.xpose.msra.mxu0 0.0
    %140 = vmatprep.subr.mxu0 0.0
    %141 = vmatpush1.xpose.msra.mxu0 0.0
    %142 = vmatprep.subr.mxu0 0.0
    %143 = vmatpush1.xpose.msra.mxu0 0.0
    %144 = vmatprep.subr.mxu0 0.0
    %145 = vmatpush1.xpose.msra.mxu0 0.0
    %146 = vmatprep.subr.mxu0 0.0
    %147 = vmatpush1.xpose.msra.mxu0 0.0
    %148 = vmatprep.subr.mxu0 0.0
    %149 = vmatpush1.xpose.msra.mxu0 0.0
    %150 = vmatprep.subr.mxu0 0.0
    %151 = vmatpush1.xpose.msra.mxu0 0.0
    %152 = vmatprep.subr.mxu0 0.0
    %153 = vmatpush1.xpose.msra.mxu0 0.0
    %154 = vmatprep.subr.mxu0 0.0
    %155 = vmatpush1.xpose.msra.mxu0 0.0
    %156 = vmatprep.subr.mxu0 0.0
    %157 = vmatpush1.xpose.msra.mxu0 0.0
    %158 = vmatprep.subr.mxu0 0.0
    %159 = vmatpush1.xpose.msra.mxu0 0.0
    %160 = vmatprep.subr.mxu0 0.0
    %161 = vmatpush1.xpose.msra.mxu0 0.0
    %162 = vmatprep.subr.mxu0 0.0
    %163 = vmatpush1.xpose.msra.mxu0 0.0
    %164 = vmatprep.subr.mxu0 0.0
    %165 = vmatpush1.xpose.msra.mxu0 0.0
    %166 = vmatprep.subr.mxu0 0.0
    %167 = vmatpush1.xpose.msra.mxu0 0.0
    %168 = vmatprep.mubr.f32.mxu0 0.0
    %169 = vmatmul.mubr.f32.gmra.mrb[0].mxu0 %v56
    %v170 = vpop.f32.mrb[0].mxu0
    %v171 = vadd.f32 0.0, %v170
    %v172 = vpop.f32.mrb[0].mxu0
    %173 = vmatprep.mubr.f32.mxu0 0.0
    %174 = vmatmul.mubr.f32.gmra.mrb[0].mxu0 %v57
    %v175 = vpop.f32.mrb[0].mxu0
    %v176 = vadd.f32 0.0, %v175
    %v177 = vpop.f32.mrb[0].mxu0
    %178 = vmatprep.mubr.f32.mxu0 0.0
    %179 = vmatmul.mubr.f32.gmra.mrb[0].mxu0 %v58
    %v180 = vpop.f32.mrb[0].mxu0
    %v181 = vadd.f32 0.0, %v180
    %v182 = vpop.f32.mrb[0].mxu0
    %183 = vmatprep.mubr.f32.mxu0 0.0
    %184 = vmatmul.mubr.f32.gmra.mrb[0].mxu0 %v59
    %v185 = vpop.f32.mrb[0].mxu0
    %v186 = vadd.f32 0.0, %v185
    %v187 = vpop.f32.mrb[0].mxu0
    %188 = vmatprep.mubr.f32.mxu0 0.0
    %189 = vmatmul.mubr.f32.gmra.mrb[0].mxu0 %v60
    %v190 = vpop.f32.mrb[0].mxu0
    %v191 = vadd.f32 0.0, %v190
    %v192 = vpop.f32.mrb[0].mxu0
    %193 = vmatprep.mubr.f32.mxu0 0.0
    %194 = vmatmul.mubr.f32.gmra.mrb[0].mxu0 %v61
    %v195 = vpop.f32.mrb[0].mxu0
    %v196 = vadd.f32 0.0, %v195
    %v197 = vpop.f32.mrb[0].mxu0
    %198 = vmatprep.mubr.f32.mxu0 0.0
    %199 = vmatmul.mubr.f32.gmra.mrb[0].mxu0 %v62
    %v200 = vpop.f32.mrb[0].mxu0
    %v201 = vadd.f32 0.0, %v200
    %v202 = vpop.f32.mrb[0].mxu0
    %203 = vmatprep.mubr.f32.mxu0 0.0
    %204 = vmatmul.mubr.f32.gmra.mrb[0].mxu0 %v63
    %v205 = vpop.f32.mrb[0].mxu0
    %v206 = vadd.f32 0.0, %v205
    %v207 = vpop.f32.mrb[0].mxu0
    %208 = vmatprep.mubr.f32.mxu0 0.0
    %209 = vmatmul.mubr.f32.gmra.mrb[0].mxu0 %v64
    %v210 = vpop.f32.mrb[0].mxu0
    %v211 = vadd.f32 0.0, %v210
    %v212 = vpop.f32.mrb[0].mxu0
    %213 = vmatprep.mubr.f32.mxu0 0.0
    %214 = vmatmul.mubr.f32.gmra.mrb[0].mxu0 %v65
    %v215 = vpop.f32.mrb[0].mxu0
    %v216 = vadd.f32 0.0, %v215
    %v217 = vpop.f32.mrb[0].mxu0
    %218 = vmatprep.mubr.f32.mxu0 0.0
    %219 = vmatmul.mubr.f32.gmra.mrb[0].mxu0 %v66
    %v220 = vpop.f32.mrb[0].mxu0
    %v221 = vadd.f32 0.0, %v220
    %v222 = vpop.f32.mrb[0].mxu0
    %223 = vmatprep.mubr.f32.mxu0 0.0
    %224 = vmatmul.mubr.f32.gmra.mrb[0].mxu0 %v67
    %v225 = vpop.f32.mrb[0].mxu0
    %v226 = vadd.f32 0.0, %v225
    %v227 = vpop.f32.mrb[0].mxu0
    %228 = vmatprep.mubr.f32.mxu0 0.0
    %229 = vmatmul.mubr.f32.gmra.mrb[0].mxu0 %v68
    %v230 = vpop.f32.mrb[0].mxu0
    %v231 = vadd.f32 0.0, %v230
    %v232 = vpop.f32.mrb[0].mxu0
    %233 = vmatprep.mubr.f32.mxu0 0.0
    %234 = vmatmul.mubr.f32.gmra.mrb[0].mxu0 %v69
    %v235 = vpop.f32.mrb[0].mxu0
    %v236 = vadd.f32 0.0, %v235
    %v237 = vpop.f32.mrb[0].mxu0
    %238 = vmatprep.mubr.f32.mxu0 0.0
    %239 = vmatmul.mubr.f32.gmra.mrb[0].mxu0 %v70
    %v240 = vpop.f32.mrb[0].mxu0
    %v241 = vadd.f32 0.0, %v240
    %v242 = vpop.f32.mrb[0].mxu0
    %243 = vmatprep.mubr.f32.mxu0 0.0
    %244 = vmatmul.mubr.f32.gmra.mrb[0].mxu0 %v71
    %v245 = vpop.f32.mrb[0].mxu0
    %v246 = vadd.f32 0.0, %v245
    %v247 = vpop.f32.mrb[0].mxu0
    %248 = vdwg.mxu0
    %v249 = vmul.f32 %v171, %v171
    %v250 = vmul.f32 %v176, %v176
    %v251 = vmul.f32 %v181, %v181
    %v252 = vmul.f32 %v186, %v186
    %v253 = vmul.f32 %v191, %v191
    %v254 = vmul.f32 %v196, %v196
    %v255 = vmul.f32 %v201, %v201
    %v256 = vmul.f32 %v206, %v206
    %v257 = vmul.f32 %v211, %v211
    %v258 = vmul.f32 %v216, %v216
    %v259 = vmul.f32 %v221, %v221
    %v260 = vmul.f32 %v226, %v226
    %v261 = vmul.f32 %v231, %v231
    %v262 = vmul.f32 %v236, %v236
    %v263 = vmul.f32 %v241, %v241
    %v264 = vmul.f32 %v246, %v246
    %265 = vadd.xlane.f32.xlu0 %v249
    %v266 = vpop.xlane.xlu0 %265
    %267 = vadd.xlane.f32.xlu0 %v250
    %v268 = vpop.xlane.xlu0 %267
    %269 = vadd.xlane.f32.xlu0 %v251
    %v270 = vpop.xlane.xlu0 %269
    %271 = vadd.xlane.f32.xlu0 %v252
    %v272 = vpop.xlane.xlu0 %271
    %273 = vadd.xlane.f32.xlu0 %v253
    %v274 = vpop.xlane.xlu0 %273
    %275 = vadd.xlane.f32.xlu0 %v254
    %v276 = vpop.xlane.xlu0 %275
    %277 = vadd.xlane.f32.xlu0 %v255
    %v278 = vpop.xlane.xlu0 %277
    %279 = vadd.xlane.f32.xlu0 %v256
    %v280 = vpop.xlane.xlu0 %279
    %281 = vadd.xlane.f32.xlu0 %v257
    %v282 = vpop.xlane.xlu0 %281
    %283 = vadd.xlane.f32.xlu0 %v258
    %v284 = vpop.xlane.xlu0 %283
    %285 = vadd.xlane.f32.xlu0 %v259
    %v286 = vpop.xlane.xlu0 %285
    %287 = vadd.xlane.f32.xlu0 %v260
    %v288 = vpop.xlane.xlu0 %287
    %289 = vadd.xlane.f32.xlu0 %v261
    %v290 = vpop.xlane.xlu0 %289
    %291 = vadd.xlane.f32.xlu0 %v262
    %v292 = vpop.xlane.xlu0 %291
    %293 = vadd.xlane.f32.xlu0 %v263
    %v294 = vpop.xlane.xlu0 %293
    %295 = vadd.xlane.f32.xlu0 %v264
    %v296 = vpop.xlane.xlu0 %295
    %v297 = vrsqrt.pop %v266
    %v298 = vrsqrt.pop %v268
    %v299 = vrsqrt.pop %v270
    %v300 = vrsqrt.pop %v272
    %v301 = vrsqrt.pop %v274
    %v302 = vrsqrt.pop %v276
    %v303 = vrsqrt.pop %v278
    %v304 = vrsqrt.pop %v280
    %v305 = vrsqrt.pop %v282
    %v306 = vrsqrt.pop %v284
    %v307 = vrsqrt.pop %v286
    %v308 = vrsqrt.pop %v288
    %v309 = vrsqrt.pop %v290
    %v310 = vrsqrt.pop %v292
    %v311 = vrsqrt.pop %v294
    %v312 = vrsqrt.pop %v296
    %v313 = vmul.f32 %v297, 8.0
    %v314 = vmul.f32 %v298, 8.0
    %v315 = vmul.f32 %v299, 8.0
    %v316 = vmul.f32 %v300, 8.0
    %v317 = vmul.f32 %v301, 8.0
    %v318 = vmul.f32 %v302, 8.0
    %v319 = vmul.f32 %v303, 8.0
    %v320 = vmul.f32 %v304, 8.0
    %v321 = vmul.f32 %v305, 8.0
    %v322 = vmul.f32 %v306, 8.0
    %v323 = vmul.f32 %v307, 8.0
    %v324 = vmul.f32 %v308, 8.0
    %v325 = vmul.f32 %v309, 8.0
    %v326 = vmul.f32 %v310, 8.0
    %v327 = vmul.f32 %v311, 8.0
    %v328 = vmul.f32 %v312, 8.0
    %v329 = vmul.f32 %v171, %v313
    %v330 = vmul.f32 %v176, %v314
    %v331 = vmul.f32 %v181, %v315
    %v332 = vmul.f32 %v186, %v316
    %v333 = vmul.f32 %v191, %v317
    %v334 = vmul.f32 %v196, %v318
    %v335 = vmul.f32 %v201, %v319
    %v336 = vmul.f32 %v206, %v320
    %v337 = vmul.f32 %v211, %v321
    %v338 = vmul.f32 %v216, %v322
    %v339 = vmul.f32 %v221, %v323
    %v340 = vmul.f32 %v226, %v324
    %v341 = vmul.f32 %v231, %v325
    %v342 = vmul.f32 %v236, %v326
    %v343 = vmul.f32 %v241, %v327
    %v344 = vmul.f32 %v246, %v328
    %v345 = vmul.f32 %v329, 0.5
    %v346 = vmul.f32 %v330, 0.5
    %v347 = vmul.f32 %v331, 0.5
    %v348 = vmul.f32 %v332, 0.5
    %v349 = vmul.f32 %v333, 0.5
    %v350 = vmul.f32 %v334, 0.5
    %v351 = vmul.f32 %v335, 0.5
    %v352 = vmul.f32 %v336, 0.5
    %v353 = vmul.f32 %v337, 0.5
    %v354 = vmul.f32 %v338, 0.5
    %v355 = vmul.f32 %v339, 0.5
    %v356 = vmul.f32 %v340, 0.5
    %v357 = vmul.f32 %v341, 0.5
    %v358 = vmul.f32 %v342, 0.5
    %v359 = vmul.f32 %v343, 0.5
    %v360 = vmul.f32 %v344, 0.5
    %v361 = vmul.f32 %v329, 0.70710677
    %v362 = vmul.f32 %v330, 0.70710677
    %v363 = vmul.f32 %v331, 0.70710677
    %v364 = vmul.f32 %v332, 0.70710677
    %v365 = vmul.f32 %v333, 0.70710677
    %v366 = vmul.f32 %v334, 0.70710677
    %v367 = vmul.f32 %v335, 0.70710677
    %v368 = vmul.f32 %v336, 0.70710677
    %v369 = vmul.f32 %v337, 0.70710677
    %v370 = vmul.f32 %v338, 0.70710677
    %v371 = vmul.f32 %v339, 0.70710677
    %v372 = vmul.f32 %v340, 0.70710677
    %v373 = vmul.f32 %v341, 0.70710677
    %v374 = vmul.f32 %v342, 0.70710677
    %v375 = vmul.f32 %v343, 0.70710677
    %v376 = vmul.f32 %v344, 0.70710677
    %v377 = verf.f32.pop %v361
    %v378 = verf.f32.pop %v362
    %v379 = verf.f32.pop %v363
    %v380 = verf.f32.pop %v364
    %v381 = verf.f32.pop %v365
    %v382 = verf.f32.pop %v366
    %v383 = verf.f32.pop %v367
    %v384 = verf.f32.pop %v368
    %v385 = verf.f32.pop %v369
    %v386 = verf.f32.pop %v370
    %v387 = verf.f32.pop %v371
    %v388 = verf.f32.pop %v372
    %v389 = verf.f32.pop %v373
    %v390 = verf.f32.pop %v374
    %v391 = verf.f32.pop %v375
    %v392 = verf.f32.pop %v376
    %v393 = vadd.f32 %v377, 1.0
    %v394 = vadd.f32 %v378, 1.0
    %v395 = vadd.f32 %v379, 1.0
    %v396 = vadd.f32 %v380, 1.0
    %v397 = vadd.f32 %v381, 1.0
    %v398 = vadd.f32 %v382, 1.0
    %v399 = vadd.f32 %v383, 1.0
    %v400 = vadd.f32 %v384, 1.0
    %v401 = vadd.f32 %v385, 1.0
    %v402 = vadd.f32 %v386, 1.0
    %v403 = vadd.f32 %v387, 1.0
    %v404 = vadd.f32 %v388, 1.0
    %v405 = vadd.f32 %v389, 1.0
    %v406 = vadd.f32 %v390, 1.0
    %v407 = vadd.f32 %v391, 1.0
    %v408 = vadd.f32 %v392, 1.0
    %v409 = vmul.f32 %v345, %v393
    %v410 = vmul.f32 %v346, %v394
    %v411 = vmul.f32 %v347, %v395
    %v412 = vmul.f32 %v348, %v396
    %v413 = vmul.f32 %v349, %v397
    %v414 = vmul.f32 %v350, %v398
    %v415 = vmul.f32 %v351, %v399
    %v416 = vmul.f32 %v352, %v400
    %v417 = vmul.f32 %v353, %v401
    %v418 = vmul.f32 %v354, %v402
    %v419 = vmul.f32 %v355, %v403
    %v420 = vmul.f32 %v356, %v404
    %v421 = vmul.f32 %v357, %v405
    %v422 = vmul.f32 %v358, %v406
    %v423 = vmul.f32 %v359, %v407
    %v424 = vmul.f32 %v360, %v408
    %425 = vmatprep.subr.mxu0 0.0
    %426 = vmatpush1.msra.mxu0 %v88
    %427 = vmatprep.subr.mxu0 0.0
    %428 = vmatpush1.msra.mxu0 %v89
    %429 = vmatprep.subr.mxu0 0.0
    %430 = vmatpush1.msra.mxu0 %v90
    %431 = vmatprep.subr.mxu0 0.0
    %432 = vmatpush1.msra.mxu0 %v91
    %433 = vmatprep.subr.mxu0 0.0
    %434 = vmatpush1.msra.mxu0 %v92
    %435 = vmatprep.subr.mxu0 0.0
    %436 = vmatpush1.msra.mxu0 %v93
    %437 = vmatprep.subr.mxu0 0.0
    %438 = vmatpush1.msra.mxu0 %v94
    %439 = vmatprep.subr.mxu0 0.0
    %440 = vmatpush1.msra.mxu0 %v95
    %441 = vmatprep.subr.mxu0 0.0
    %442 = vmatpush1.msra.mxu0 %v96
    %443 = vmatprep.subr.mxu0 0.0
    %444 = vmatpush1.msra.mxu0 %v97
    %445 = vmatprep.subr.mxu0 0.0
    %446 = vmatpush1.msra.mxu0 %v98
    %447 = vmatprep.subr.mxu0 0.0
    %448 = vmatpush1.msra.mxu0 %v99
    %449 = vmatprep.subr.mxu0 0.0
    %450 = vmatpush1.msra.mxu0 %v100
    %451 = vmatprep.subr.mxu0 0.0
    %452 = vmatpush1.msra.mxu0 %v101
    %453 = vmatprep.subr.mxu0 0.0
    %454 = vmatpush1.msra.mxu0 %v102
    %455 = vmatprep.subr.mxu0 0.0
    %456 = vmatpush1.msra.mxu0 %v103
    %457 = vmatprep.subr.mxu0 0.0
    %458 = vmatpush1.msra.mxu0 0.0
    %459 = vmatprep.subr.mxu0 0.0
    %460 = vmatpush1.msra.mxu0 0.0
    %461 = vmatprep.subr.mxu0 0.0
    %462 = vmatpush1.msra.mxu0 0.0
    %463 = vmatprep.subr.mxu0 0.0
    %464 = vmatpush1.msra.mxu0 0.0
    %465 = vmatprep.subr.mxu0 0.0
    %466 = vmatpush1.msra.mxu0 0.0
    %467 = vmatprep.subr.mxu0 0.0
    %468 = vmatpush1.msra.mxu0 0.0
    %469 = vmatprep.subr.mxu0 0.0
    %470 = vmatpush1.msra.mxu0 0.0
    %471 = vmatprep.subr.mxu0 0.0
    %472 = vmatpush1.msra.mxu0 0.0
    %473 = vmatprep.subr.mxu0 0.0
    %474 = vmatpush1.msra.mxu0 0.0
    %475 = vmatprep.subr.mxu0 0.0
    %476 = vmatpush1.msra.mxu0 0.0
    %477 = vmatprep.subr.mxu0 0.0
    %478 = vmatpush1.msra.mxu0 0.0
    %479 = vmatprep.subr.mxu0 0.0
    %480 = vmatpush1.msra.mxu0 0.0
    %481 = vmatprep.subr.mxu0 0.0
    %482 = vmatpush1.msra.mxu0 0.0
    %483 = vmatprep.subr.mxu0 0.0
    %484 = vmatpush1.msra.mxu0 0.0
    %485 = vmatprep.subr.mxu0 0.0
    %486 = vmatpush1.msra.mxu0 0.0
    %487 = vmatprep.subr.mxu0 0.0
    %488 = vmatpush1.msra.mxu0 0.0
    %489 = vmatprep.mubr.f32.mxu0 0.0
    %490 = vmatmul.mubr.f32.gmra.mrb[0].mxu0 %v409
    %v491 = vpop.f32.mrb[0].mxu0
    %v492 = vadd.f32 0.0, %v491
    %v493 = vpop.f32.mrb[0].mxu0
    %494 = vmatprep.mubr.f32.mxu0 0.0
    %495 = vmatmul.mubr.f32.gmra.mrb[0].mxu0 %v410
    %v496 = vpop.f32.mrb[0].mxu0
    %v497 = vadd.f32 0.0, %v496
    %v498 = vpop.f32.mrb[0].mxu0
    %499 = vmatprep.mubr.f32.mxu0 0.0
    %500 = vmatmul.mubr.f32.gmra.mrb[0].mxu0 %v411
    %v501 = vpop.f32.mrb[0].mxu0
    %v502 = vadd.f32 0.0, %v501
    %v503 = vpop.f32.mrb[0].mxu0
    %504 = vmatprep.mubr.f32.mxu0 0.0
    %505 = vmatmul.mubr.f32.gmra.mrb[0].mxu0 %v412
    %v506 = vpop.f32.mrb[0].mxu0
    %v507 = vadd.f32 0.0, %v506
    %v508 = vpop.f32.mrb[0].mxu0
    %509 = vmatprep.mubr.f32.mxu0 0.0
    %510 = vmatmul.mubr.f32.gmra.mrb[0].mxu0 %v413
    %v511 = vpop.f32.mrb[0].mxu0
    %v512 = vadd.f32 0.0, %v511
    %v513 = vpop.f32.mrb[0].mxu0
    %514 = vmatprep.mubr.f32.mxu0 0.0
    %515 = vmatmul.mubr.f32.gmra.mrb[0].mxu0 %v414
    %v516 = vpop.f32.mrb[0].mxu0
    %v517 = vadd.f32 0.0, %v516
    %v518 = vpop.f32.mrb[0].mxu0
    %519 = vmatprep.mubr.f32.mxu0 0.0
    %520 = vmatmul.mubr.f32.gmra.mrb[0].mxu0 %v415
    %v521 = vpop.f32.mrb[0].mxu0
    %v522 = vadd.f32 0.0, %v521
    %v523 = vpop.f32.mrb[0].mxu0
    %524 = vmatprep.mubr.f32.mxu0 0.0
    %525 = vmatmul.mubr.f32.gmra.mrb[0].mxu0 %v416
    %v526 = vpop.f32.mrb[0].mxu0
    %v527 = vadd.f32 0.0, %v526
    %v528 = vpop.f32.mrb[0].mxu0
    %529 = vmatprep.mubr.f32.mxu0 0.0
    %530 = vmatmul.mubr.f32.gmra.mrb[0].mxu0 %v417
    %v531 = vpop.f32.mrb[0].mxu0
    %v532 = vadd.f32 0.0, %v531
    %v533 = vpop.f32.mrb[0].mxu0
    %534 = vmatprep.mubr.f32.mxu0 0.0
    %535 = vmatmul.mubr.f32.gmra.mrb[0].mxu0 %v418
    %v536 = vpop.f32.mrb[0].mxu0
    %v537 = vadd.f32 0.0, %v536
    %v538 = vpop.f32.mrb[0].mxu0
    %539 = vmatprep.mubr.f32.mxu0 0.0
    %540 = vmatmul.mubr.f32.gmra.mrb[0].mxu0 %v419
    %v541 = vpop.f32.mrb[0].mxu0
    %v542 = vadd.f32 0.0, %v541
    %v543 = vpop.f32.mrb[0].mxu0
    %544 = vmatprep.mubr.f32.mxu0 0.0
    %545 = vmatmul.mubr.f32.gmra.mrb[0].mxu0 %v420
    %v546 = vpop.f32.mrb[0].mxu0
    %v547 = vadd.f32 0.0, %v546
    %v548 = vpop.f32.mrb[0].mxu0
    %549 = vmatprep.mubr.f32.mxu0 0.0
    %550 = vmatmul.mubr.f32.gmra.mrb[0].mxu0 %v421
    %v551 = vpop.f32.mrb[0].mxu0
    %v552 = vadd.f32 0.0, %v551
    %v553 = vpop.f32.mrb[0].mxu0
    %554 = vmatprep.mubr.f32.mxu0 0.0
    %555 = vmatmul.mubr.f32.gmra.mrb[0].mxu0 %v422
    %v556 = vpop.f32.mrb[0].mxu0
    %v557 = vadd.f32 0.0, %v556
    %v558 = vpop.f32.mrb[0].mxu0
    %559 = vmatprep.mubr.f32.mxu0 0.0
    %560 = vmatmul.mubr.f32.gmra.mrb[0].mxu0 %v423
    %v561 = vpop.f32.mrb[0].mxu0
    %v562 = vadd.f32 0.0, %v561
    %v563 = vpop.f32.mrb[0].mxu0
    %564 = vmatprep.mubr.f32.mxu0 0.0
    %565 = vmatmul.mubr.f32.gmra.mrb[0].mxu0 %v424
    %v566 = vpop.f32.mrb[0].mxu0
    %v567 = vadd.f32 0.0, %v566
    %v568 = vpop.f32.mrb[0].mxu0
    %569 = vdwg.mxu0
    %570 = vst [vmem:[#allocation8] sm:$0xff] %v492
    %571 = vst [vmem:[#allocation8 + $0x8] sm:$0xff] %v497
    %572 = vst [vmem:[#allocation8 + $0x10] sm:$0xff] %v502
    %573 = vst [vmem:[#allocation8 + $0x18] sm:$0xff] %v507
    %574 = vst [vmem:[#allocation8 + $0x20] sm:$0xff] %v512
    %575 = vst [vmem:[#allocation8 + $0x28] sm:$0xff] %v517
    %576 = vst [vmem:[#allocation8 + $0x30] sm:$0xff] %v522
    %577 = vst [vmem:[#allocation8 + $0x38] sm:$0xff] %v527
    %578 = vst [vmem:[#allocation8 + $0x40] sm:$0xff] %v532
    %579 = vst [vmem:[#allocation8 + $0x48] sm:$0xff] %v537
    %580 = vst [vmem:[#allocation8 + $0x50] sm:$0xff] %v542
    %581 = vst [vmem:[#allocation8 + $0x58] sm:$0xff] %v547
    %582 = vst [vmem:[#allocation8 + $0x60] sm:$0xff] %v552
    %583 = vst [vmem:[#allocation8 + $0x68] sm:$0xff] %v557
    %584 = vst [vmem:[#allocation8 + $0x70] sm:$0xff] %v562
    %585 = vst [vmem:[#allocation8 + $0x78] sm:$0xff] %v567
    // Predicated region
    $region26: #{tpu_custom_call.1} parent=1 // pred_check
      _
    $region27: #{tpu_custom_call.1} parent=1 // pred_check_branch
      %587 = sbr.rel (0) target = $region29
    $region28: #{tpu_custom_call.1} parent=1 // pred_region
      %s589 = ssub.s32 2048, 2048
      %590 = vsyncadd [#allocation4], %s589
      %s591 = sshll.u32 [#allocation8], 4
      %s592 = int_to_ptr.vmem [resolvable:$true] %s591
      %597 = dma.vmem_to_hbm [thread:$0]  %s592, 2048, %s3, [#allocation4], 128, 128, 8
    $region29: #{tpu_custom_call.1} parent=1 // pred_fallthru
      _
    // Predicated region
    $region30: #{tpu_custom_call.1} parent=1 // pred_check
      _
    $region31: #{tpu_custom_call.1} parent=1 // pred_check_branch
      %599 = sbr.rel (0) target = $region33
    $region32: #{tpu_custom_call.1} parent=1 // pred_region
      %600 = dma.done [#allocation4], 2048
    $region33: #{tpu_custom_call.1} parent=1 // pred_fallthru
      _
    %601 = vsyncpa [#allocation3], 1
    %602 = vsyncpa [#allocation6], 1
    %603 = vsyncpa [#allocation4], 1

</llo_original>
